<compile_context>
chip_gen: v7x
topology: tpu7x:2x2x1
jax: 0.10.0
libtpu: 0.0.40
codegen_flags: <defaults>
</compile_context>

<pallas_src>
import math
import functools

import jax
import jax.numpy as jnp
import numpy as np
from jax.experimental import pallas as pl
from jax.experimental.pallas import tpu as pltpu


def _sinusoidal_kernel(ts_ref, expand_ref, shift_ref, freq_ref, phase_ref,
                       out_ref, *, amp, offset):
    # ts_ref:     (R, Q=128)   f32   128 consecutive timesteps per row
    # expand_ref: (Q, W=Q*D)   bf16  0/1 selection matrix, E[q, w] = (w // D == q)
    # shift_ref:  (1, W)       f32   per-lane shift  (period-D pattern)
    # freq_ref:   (1, W)       f32   per-lane freq   (period-D pattern)
    # phase_ref:  (1, W)       f32   per-lane phase  (period-D pattern)
    # out_ref:    (R, W)       out dtype, channel-fastest interleaved layout
    ts = ts_ref[...]                                       # (R, Q) f32

    if ts_ref.shape[-1] == out_ref.shape[-1]:
        # D == 1: no channel interleaving needed.
        ts_exp = ts
    else:
        # Expand each timestep D times along lanes using the MXU (idle in this
        # kernel).  Split ts into three exactly-bf16-representable pieces so the
        # 0/1 matmul is exact regardless of the MXU's internal precision.
        h1 = ts.astype(jnp.bfloat16)
        r1 = ts - h1.astype(jnp.float32)
        h2 = r1.astype(jnp.bfloat16)
        r2 = r1 - h2.astype(jnp.float32)
        h3 = r2.astype(jnp.bfloat16)
        e = expand_ref[...]                                # (Q, W) bf16
        dims = (((1,), (0,)), ((), ()))
        mm = lambda h: jax.lax.dot_general(
            h, e, dims, preferred_element_type=jnp.float32)
        ts_exp = (mm(h1) + mm(h2)) + mm(h3)                # (R, W): ts[r, w // D]

    # Same op order as the PyTorch reference: (ts - shift) * freq  (+ phase).
    angles = (ts_exp - shift_ref[...]) * freq_ref[...] + phase_ref[...]
    y = jnp.sin(angles)
    if amp != 1.0:
        y = amp * y
    if offset != 0.0:
        y = y + offset
    out_ref[...] = y.astype(out_ref.dtype)


class SinusoidalSeqEmbedderPallas:
    """JAX/Pallas equivalent of SinusoidalSeqEmbedder (inference forward)."""

    LANE_TS = 128                     # Q: timesteps per output row
    TARGET_OUT_BLOCK_BYTES = 1 << 20  # ~1 MiB output block per grid step

    def __init__(self, sin_or_cos="cos", amp=1.0, offset=0.0,
                 periods=1, shifts=0, dtype=jnp.float32):
        periods = np.atleast_1d(np.asarray(periods, dtype=np.float32)).reshape(-1)
        shifts = np.asarray(shifts, dtype=np.float32)
        if shifts.ndim == 0:
            shifts = np.full_like(periods, float(shifts))
        shifts = shifts.reshape(-1)
        bands = periods.shape[0]
        assert shifts.shape[0] == bands

        freqs = (2.0 * math.pi) / periods   # matches torch 'freqs' buffer

        dim_per_band = 2 if sin_or_cos == "sincos" else 1
        self.embedding_dim = dim_per_band * bands
        self.sin_or_cos = sin_or_cos
        self.amp = float(amp)
        self.offset = float(offset)
        self.dtype = dtype

        # Per-output-channel parameters (numpy glue at init time).
        if sin_or_cos == "sincos":
            # interleaved [sin(a_b), cos(a_b)] per band; cos(x) = sin(x + pi/2)
            freqs_ex = np.repeat(freqs, 2)
            shifts_ex = np.repeat(shifts, 2)
            phase_ex = np.tile(np.array([0.0, math.pi / 2.0]), bands)
        elif sin_or_cos == "cos":
            freqs_ex, shifts_ex = freqs, shifts
            phase_ex = np.full((bands,), math.pi / 2.0)
        elif sin_or_cos == "sin":
            freqs_ex, shifts_ex = freqs, shifts
            phase_ex = np.zeros((bands,))
        else:
            raise RuntimeError(f"Invalid sin_or_cos={sin_or_cos}")

        D = self.embedding_dim
        Q = self.LANE_TS
        W = Q * D
        self.W = W

        # Lane-periodic parameter patterns (period D), shape (1, W), f32.
        lane_d = np.arange(W) % D
        self.freq_pat = jnp.asarray(freqs_ex[lane_d].reshape(1, W), jnp.float32)
        self.shift_pat = jnp.asarray(shifts_ex[lane_d].reshape(1, W), jnp.float32)
        self.phase_pat = jnp.asarray(phase_ex[lane_d].reshape(1, W), jnp.float32)

        # 0/1 expansion matrix E[q, w] = 1 iff w // D == q  (exact in bf16).
        exp = (np.arange(W)[None, :] // D == np.arange(Q)[:, None])
        self.expand = jnp.asarray(exp.astype(np.float32), jnp.bfloat16)

        # TODO(synk): learnable=True (autodiff through freqs/shifts) is not
        # implemented here; this class covers the inference forward only.

    def __call__(self, ts: jax.Array) -> jax.Array:
        orig_shape = ts.shape
        D = self.embedding_dim
        Q = self.LANE_TS
        W = self.W

        n = int(np.prod(orig_shape)) if len(orig_shape) else 1
        if n == 0:
            return jnp.zeros((*orig_shape, D), self.dtype)

        # Pad the flat timestep stream up to a multiple of Q (and at least 8
        # rows so every matmul M-dim is a multiple of 8).  Padding is at most
        # ~1K elements and is sliced off after the kernel.
        n_pad = max(Q * 8, ((n + Q - 1) // Q) * Q)
        ts_flat = ts.reshape(-1).astype(jnp.float32)
        if n_pad != n:
            ts_flat = jnp.pad(ts_flat, (0, n_pad - n))
        n_rows = n_pad // Q
        ts2d = ts_flat.reshape(n_rows, Q)

        # Row-tile: ~1 MiB f32 output blocks (=> 32K+ timesteps per step), and
        # at least 2 grid steps when there is enough work (v7x has 2 TCs).
        r_target = max(8, (self.TARGET_OUT_BLOCK_BYTES // (W * 4)) // 8 * 8)
        if n_rows > 8:
            half = (((n_rows + 1) // 2) + 7) // 8 * 8
            r_tile = min(r_target, half)
        else:
            r_tile = n_rows
        grid = (pl.cdiv(n_rows, r_tile),)

        kernel = functools.partial(_sinusoidal_kernel,
                                   amp=self.amp, offset=self.offset)

        out2d = pl.pallas_call(
            kernel,
            out_shape=jax.ShapeDtypeStruct((n_rows, W), self.dtype),
            grid_spec=pltpu.PrefetchScalarGridSpec(
                num_scalar_prefetch=0,
                grid=grid,
                in_specs=[
                    pl.BlockSpec((r_tile, Q), lambda i: (i, 0)),  # ts rows
                    pl.BlockSpec((Q, W), lambda i: (0, 0)),       # expansion E
                    pl.BlockSpec((1, W), lambda i: (0, 0)),       # shift pattern
                    pl.BlockSpec((1, W), lambda i: (0, 0)),       # freq pattern
                    pl.BlockSpec((1, W), lambda i: (0, 0)),       # phase pattern
                ],
                out_specs=pl.BlockSpec((r_tile, W), lambda i: (i, 0)),
            ),
            compiler_params=pltpu.CompilerParams(
                dimension_semantics=("parallel",)),
        )(ts2d, self.expand, self.shift_pat, self.freq_pat, self.phase_pat)

        # out2d's row-major flat order IS the desired (*ts.shape, D) order:
        # only reshapes (and, if padded, a contiguous prefix slice) remain.
        flat = out2d.reshape(-1)
        if n_pad != n:
            flat = flat[: n * D]
        return flat.reshape(*orig_shape, D)


def _reference(ts, sin_or_cos, amp, offset, periods, shifts):
    periods = np.atleast_1d(np.asarray(periods, np.float32))
    shifts_v = np.asarray(shifts, np.float32)
    if shifts_v.ndim == 0:
        shifts_v = np.full_like(periods, float(shifts_v))
    shifts_v = shifts_v.reshape(-1)
    freqs = jnp.asarray(2.0 * math.pi / periods)
    shifts_j = jnp.asarray(shifts_v)
    angles = (ts[..., None] - shifts_j) * freqs
    if sin_or_cos == "sincos":
        angles = jnp.stack([angles, angles + math.pi / 2.0], axis=-1)
        angles = angles.reshape(*angles.shape[:-2], -1)
    elif sin_or_cos == "cos":
        angles = angles + math.pi / 2.0
    return amp * jnp.sin(angles) + offset


if __name__ == "__main__":
    key = jax.random.PRNGKey(0)
    k1, k2 = jax.random.split(key)

    periods = [1.0, 2.5, 4.0, 8.0]   # bands = 4
    band_shifts = [0.0, 0.1, -0.2, 0.5]

    ok = True

    # Aligned case: n = 2*512 = 1024 timesteps (multiple of 128 -> no padding).
    ts_a = jax.random.uniform(k1, (2, 512), jnp.float32, 0.0, 10.0)
    for mode in ("cos", "sin", "sincos"):
        emb = SinusoidalSeqEmbedderPallas(
            sin_or_cos=mode, amp=1.5, offset=0.25,
            periods=periods, shifts=band_shifts)
        out = jax.block_until_ready(emb(ts_a))
        ref = _reference(ts_a, mode, 1.5, 0.25, periods, band_shifts)
        expected_dim = (2 if mode == "sincos" else 1) * len(periods)
        ok &= out.shape == (2, 512, expected_dim)
        ok &= bool(jnp.allclose(out, ref, atol=1e-4, rtol=1e-4))

    # Unaligned case: n = 7*150 = 1050 (exercises padding, ragged last grid
    # block, and the amp==1 / offset==0 trace-time skip).
    ts_b = jax.random.uniform(k2, (7, 150), jnp.float32, 0.0, 10.0)
    emb = SinusoidalSeqEmbedderPallas(
        sin_or_cos="sincos", periods=periods, shifts=band_shifts)
    out = jax.block_until_ready(emb(ts_b))
    ref = _reference(ts_b, "sincos", 1.0, 0.0, periods, band_shifts)
    ok &= out.shape == (7, 150, 8)
    ok &= bool(jnp.allclose(out, ref, atol=1e-4, rtol=1e-4))

    print("KERNEL_OK" if ok else "KERNEL_MISMATCH")
</pallas_src>

<mosaic_0001>
module attributes {stable_mosaic.version = 11 : i64} {
  func.func @_sinusoidal_kernel(%arg0: i32, %arg1: memref<8x128xf32, #tpu.memory_space<vmem>>, %arg2: memref<128x512xbf16, #tpu.memory_space<vmem>>, %arg3: memref<1x512xf32, #tpu.memory_space<vmem>>, %arg4: memref<1x512xf32, #tpu.memory_space<vmem>>, %arg5: memref<1x512xf32, #tpu.memory_space<vmem>>, %arg6: memref<8x512xf32, #tpu.memory_space<vmem>>) attributes {dimension_semantics = [#tpu.dimension_semantics<parallel>], iteration_bounds = array<i64: 1>, scalar_prefetch = 0 : i64, scratch_operands = 0 : i64, tpu.core_type = #tpu.core_type<tc>, window_params = [{transform_indices = @transform_0, window_bounds = array<i64: 8, 128>}, {pipeline_mode = #tpu.pipeline_mode<synchronous>, transform_indices = @transform_1, window_bounds = array<i64: 128, 512>}, {pipeline_mode = #tpu.pipeline_mode<synchronous>, transform_indices = @transform_2, window_bounds = array<i64: 1, 512>}, {pipeline_mode = #tpu.pipeline_mode<synchronous>, transform_indices = @transform_3, window_bounds = array<i64: 1, 512>}, {pipeline_mode = #tpu.pipeline_mode<synchronous>, transform_indices = @transform_4, window_bounds = array<i64: 1, 512>}, {transform_indices = @transform_5, window_bounds = array<i64: 8, 512>}]} {
    %c0 = arith.constant 0 : index
    %c0_0 = arith.constant 0 : index
    %0 = vector.load %arg1[%c0, %c0_0] : memref<8x128xf32, #tpu.memory_space<vmem>>, vector<8x128xf32>
    %1 = arith.truncf %0 : vector<8x128xf32> to vector<8x128xbf16>
    %2 = arith.extf %1 : vector<8x128xbf16> to vector<8x128xf32>
    %3 = arith.subf %0, %2 : vector<8x128xf32>
    %4 = arith.truncf %3 : vector<8x128xf32> to vector<8x128xbf16>
    %5 = arith.extf %4 : vector<8x128xbf16> to vector<8x128xf32>
    %6 = arith.subf %3, %5 : vector<8x128xf32>
    %7 = arith.truncf %6 : vector<8x128xf32> to vector<8x128xbf16>
    %c0_1 = arith.constant 0 : index
    %c0_2 = arith.constant 0 : index
    %8 = vector.load %arg2[%c0_1, %c0_2] : memref<128x512xbf16, #tpu.memory_space<vmem>>, vector<128x512xbf16>
    %cst = arith.constant dense<0.000000e+00> : vector<8x512xf32>
    %9 = tpu.matmul %1, %8, %cst {dimension_numbers = #tpu.dot_dimension_numbers<[1], [0], [0], [1], [0, 0, 1, 1], [], []>} : vector<8x128xbf16>, vector<128x512xbf16>, vector<8x512xf32> -> vector<8x512xf32>
    %cst_3 = arith.constant dense<0.000000e+00> : vector<8x512xf32>
    %10 = tpu.matmul %4, %8, %cst_3 {dimension_numbers = #tpu.dot_dimension_numbers<[1], [0], [0], [1], [0, 0, 1, 1], [], []>} : vector<8x128xbf16>, vector<128x512xbf16>, vector<8x512xf32> -> vector<8x512xf32>
    %11 = arith.addf %9, %10 : vector<8x512xf32>
    %cst_4 = arith.constant dense<0.000000e+00> : vector<8x512xf32>
    %12 = tpu.matmul %7, %8, %cst_4 {dimension_numbers = #tpu.dot_dimension_numbers<[1], [0], [0], [1], [0, 0, 1, 1], [], []>} : vector<8x128xbf16>, vector<128x512xbf16>, vector<8x512xf32> -> vector<8x512xf32>
    %13 = arith.addf %11, %12 : vector<8x512xf32>
    %c0_5 = arith.constant 0 : index
    %c0_6 = arith.constant 0 : index
    %14 = vector.load %arg3[%c0_5, %c0_6] : memref<1x512xf32, #tpu.memory_space<vmem>>, vector<1x512xf32>
    %15 = vector.broadcast %14 : vector<1x512xf32> to vector<8x512xf32>
    %16 = arith.subf %13, %15 : vector<8x512xf32>
    %c0_7 = arith.constant 0 : index
    %c0_8 = arith.constant 0 : index
    %17 = vector.load %arg4[%c0_7, %c0_8] : memref<1x512xf32, #tpu.memory_space<vmem>>, vector<1x512xf32>
    %18 = vector.broadcast %17 : vector<1x512xf32> to vector<8x512xf32>
    %19 = arith.mulf %16, %18 : vector<8x512xf32>
    %c0_9 = arith.constant 0 : index
    %c0_10 = arith.constant 0 : index
    %20 = vector.load %arg5[%c0_9, %c0_10] : memref<1x512xf32, #tpu.memory_space<vmem>>, vector<1x512xf32>
    %21 = vector.broadcast %20 : vector<1x512xf32> to vector<8x512xf32>
    %22 = arith.addf %19, %21 : vector<8x512xf32>
    %23 = math.sin %22 : vector<8x512xf32>
    %cst_11 = arith.constant 1.500000e+00 : f32
    %24 = vector.broadcast %cst_11 : f32 to vector<8x512xf32>
    %25 = arith.mulf %24, %23 : vector<8x512xf32>
    %cst_12 = arith.constant 2.500000e-01 : f32
    %26 = vector.broadcast %cst_12 : f32 to vector<8x512xf32>
    %27 = arith.addf %25, %26 : vector<8x512xf32>
    %c0_13 = arith.constant 0 : index
    %c0_14 = arith.constant 0 : index
    %28 = vector.load %arg6[%c0_13, %c0_14] : memref<8x512xf32, #tpu.memory_space<vmem>>, vector<8x512xf32>
    tpu.vector_store %arg6[%c0_13, %c0_14], %27 {strides = array<i32>} : memref<8x512xf32, #tpu.memory_space<vmem>>, vector<8x512xf32>,
    return
  }
  func.func @transform_0(%arg0: i32) -> (i32, i32) {
    %c0_i32 = arith.constant 0 : i32
    %c0_i32_0 = arith.constant 0 : i32
    return %arg0, %c0_i32 : i32, i32
  }
  func.func @transform_1(%arg0: i32) -> (i32, i32) {
    %c0_i32 = arith.constant 0 : i32
    %c0_i32_0 = arith.constant 0 : i32
    %c0_i32_1 = arith.constant 0 : i32
    return %c0_i32, %c0_i32_0 : i32, i32
  }
  func.func @transform_2(%arg0: i32) -> (i32, i32) {
    %c0_i32 = arith.constant 0 : i32
    %c0_i32_0 = arith.constant 0 : i32
    %c0_i32_1 = arith.constant 0 : i32
    return %c0_i32, %c0_i32_0 : i32, i32
  }
  func.func @transform_3(%arg0: i32) -> (i32, i32) {
    %c0_i32 = arith.constant 0 : i32
    %c0_i32_0 = arith.constant 0 : i32
    %c0_i32_1 = arith.constant 0 : i32
    return %c0_i32, %c0_i32_0 : i32, i32
  }
  func.func @transform_4(%arg0: i32) -> (i32, i32) {
    %c0_i32 = arith.constant 0 : i32
    %c0_i32_0 = arith.constant 0 : i32
    %c0_i32_1 = arith.constant 0 : i32
    return %c0_i32, %c0_i32_0 : i32, i32
  }
  func.func @transform_5(%arg0: i32) -> (i32, i32) {
    %c0_i32 = arith.constant 0 : i32
    %c0_i32_0 = arith.constant 0 : i32
    return %arg0, %c0_i32 : i32, i32
  }
}

</mosaic_0001>

<llo_original>
// kernel: tpu_custom_call.1
$region0: #{tpu_custom_call.1}
  #allocation0 [shape = 'u32[]', space=smem, size = 0x4, offset = 0x4, fixed_abs, tag = 'smem constant byte address 0x4 - core index']
  #allocation1 [shape = 'u32[144,128]{1,0:T(1,128)}', space=vmem, size = 0x12000, scoped, tag = 'internal scratch']
  %s0 = inlined_call_operand.hbm [shape: f32[8,128], index: 0, kind: input, shape index: {}]
  %s1 = inlined_call_operand.hbm [shape: bf16[128,512], index: 1, kind: input, shape index: {}]
  %s2 = inlined_call_operand.vmem [shape: f32[1,512], index: 2, kind: input, shape index: {}]
  %s3 = inlined_call_operand.vmem [shape: f32[1,512], index: 3, kind: input, shape index: {}]
  %s4 = inlined_call_operand.vmem [shape: f32[1,512], index: 4, kind: input, shape index: {}]
  %s5 = inlined_call_operand.hbm [shape: f32[8,512], index: 5, kind: output, shape index: {}]
  %s6 = sld [smem:[#allocation0]]
  $region38: #{tpu_custom_call.1} parent=0
    _
  %s8 = ssub.s32 1, %s6
  %s9 = scalar_select 0, %s8, %s6
  $region1: #{tpu_custom_call.1} parent=0
    #allocation2 [shape = 'u8[4096]{0}', space=vmem, size = 0x1000, scoped, tag = 'input window, operand 0, single buffered']
    #allocation3 [shape = 's32[1]{0}', space=sflag, size = 0x4, scoped, tag = 'scoped memory for tpu_custom_call.1']
    #allocation4 [shape = 's32[1]{0}', space=sflag, size = 0x4, scoped, tag = 'scoped memory for tpu_custom_call.1']
    #allocation5 [shape = 'u8[131072]{0}', space=vmem, size = 0x20000, scoped, tag = 'input window, operand 1, single buffered']
    #allocation6 [shape = 's32[1]{0}', space=sflag, size = 0x4, scoped, tag = 'scoped memory for tpu_custom_call.1']
    #allocation7 [shape = 'u8[16384]{0}', space=vmem, size = 0x4000, scoped, tag = 'output window, operand 0, single buffered']
    %10 = vsyncpa [#allocation3], 0
    %11 = vsyncpa [#allocation6], 0
    %12 = vsyncpa [#allocation4], 0
    // Predicated region
    $region2: #{tpu_custom_call.1} parent=1 // pred_check
      _
    $region3: #{tpu_custom_call.1} parent=1 // pred_check_branch
      %14 = sbr.rel (0) target = $region5
    $region4: #{tpu_custom_call.1} parent=1 // pred_region
      %s16 = ssub.s32 128, 128
      %17 = vsyncadd [#allocation3], %s16
      %s19 = sshll.u32 [#allocation2], 4
      %s20 = int_to_ptr.vmem [resolvable:$true] %s19
      %22 = dma.hbm_to_vmem [thread:$0]  %s0, 128, %s20, [#allocation3]
    $region5: #{tpu_custom_call.1} parent=1 // pred_fallthru
      _
    // Predicated region
    $region6: #{tpu_custom_call.1} parent=1 // pred_check
      _
    $region7: #{tpu_custom_call.1} parent=1 // pred_check_branch
      %24 = sbr.rel (0) target = $region9
    $region8: #{tpu_custom_call.1} parent=1 // pred_region
      %s26 = ssub.s32 4096, 4096
      %27 = vsyncadd [#allocation6], %s26
      %s28 = sshll.u32 [#allocation5], 4
      %s29 = int_to_ptr.vmem [resolvable:$true] %s28
      %34 = dma.hbm_to_vmem [thread:$0]  %s1, 4096, %s29, [#allocation6], 256, 256, 16
    $region9: #{tpu_custom_call.1} parent=1 // pred_fallthru
      _
    // Predicated region
    $region10: #{tpu_custom_call.1} parent=1 // pred_check
      _
    $region11: #{tpu_custom_call.1} parent=1 // pred_check_branch
      %36 = sbr.rel (0) target = $region13
    $region12: #{tpu_custom_call.1} parent=1 // pred_region
      _
    $region13: #{tpu_custom_call.1} parent=1 // pred_fallthru
      _
    // Predicated region
    $region14: #{tpu_custom_call.1} parent=1 // pred_check
      _
    $region15: #{tpu_custom_call.1} parent=1 // pred_check_branch
      %38 = sbr.rel (0) target = $region17
    $region16: #{tpu_custom_call.1} parent=1 // pred_region
      _
    $region17: #{tpu_custom_call.1} parent=1 // pred_fallthru
      _
    // Predicated region
    $region18: #{tpu_custom_call.1} parent=1 // pred_check
      _
    $region19: #{tpu_custom_call.1} parent=1 // pred_check_branch
      %40 = sbr.rel (0) target = $region21
    $region20: #{tpu_custom_call.1} parent=1 // pred_region
      _
    $region21: #{tpu_custom_call.1} parent=1 // pred_fallthru
      _
    // Predicated region
    $region22: #{tpu_custom_call.1} parent=1 // pred_check
      _
    $region23: #{tpu_custom_call.1} parent=1 // pred_check_branch
      %42 = sbr.rel (0) target = $region25
    $region24: #{tpu_custom_call.1} parent=1 // pred_region
      %43 = dma.done [#allocation3], 128
    $region25: #{tpu_custom_call.1} parent=1 // pred_fallthru
      _
    // Predicated region
    $region26: #{tpu_custom_call.1} parent=1 // pred_check
      _
    $region27: #{tpu_custom_call.1} parent=1 // pred_check_branch
      %45 = sbr.rel (0) target = $region29
    $region28: #{tpu_custom_call.1} parent=1 // pred_region
      %46 = dma.done [#allocation6], 4096
    $region29: #{tpu_custom_call.1} parent=1 // pred_fallthru
      _
    %v48 = vld [vmem:[#allocation2] sm:$0xff]
    %v49 = vpack.c.bf16 %v48, %v48
    %v50 = vunpack.c.l.bf16 %v49
    %v51 = vsub.f32 %v48, %v50
    %v52 = vpack.c.bf16 %v51, %v51
    %v53 = vunpack.c.l.bf16 %v52
    %v54 = vsub.f32 %v51, %v53
    %v55 = vpack.c.bf16 %v54, %v54
    %v56 = vld [vmem:[#allocation5] sm:$0xff]
    %v57 = vld [vmem:[#allocation5 + $0x8] sm:$0xff]
    %v58 = vld [vmem:[#allocation5 + $0x10] sm:$0xff]
    %v59 = vld [vmem:[#allocation5 + $0x18] sm:$0xff]
    %v60 = vld [vmem:[#allocation5 + $0x20] sm:$0xff]
    %v61 = vld [vmem:[#allocation5 + $0x28] sm:$0xff]
    %v62 = vld [vmem:[#allocation5 + $0x30] sm:$0xff]
    %v63 = vld [vmem:[#allocation5 + $0x38] sm:$0xff]
    %v64 = vld [vmem:[#allocation5 + $0x40] sm:$0xff]
    %v65 = vld [vmem:[#allocation5 + $0x48] sm:$0xff]
    %v66 = vld [vmem:[#allocation5 + $0x50] sm:$0xff]
    %v67 = vld [vmem:[#allocation5 + $0x58] sm:$0xff]
    %v68 = vld [vmem:[#allocation5 + $0x60] sm:$0xff]
    %v69 = vld [vmem:[#allocation5 + $0x68] sm:$0xff]
    %v70 = vld [vmem:[#allocation5 + $0x70] sm:$0xff]
    %v71 = vld [vmem:[#allocation5 + $0x78] sm:$0xff]
    %v72 = vld [vmem:[#allocation5 + $0x80] sm:$0xff]
    %v73 = vld [vmem:[#allocation5 + $0x88] sm:$0xff]
    %v74 = vld [vmem:[#allocation5 + $0x90] sm:$0xff]
    %v75 = vld [vmem:[#allocation5 + $0x98] sm:$0xff]
    %v76 = vld [vmem:[#allocation5 + $0xa0] sm:$0xff]
    %v77 = vld [vmem:[#allocation5 + $0xa8] sm:$0xff]
    %v78 = vld [vmem:[#allocation5 + $0xb0] sm:$0xff]
    %v79 = vld [vmem:[#allocation5 + $0xb8] sm:$0xff]
    %v80 = vld [vmem:[#allocation5 + $0xc0] sm:$0xff]
    %v81 = vld [vmem:[#allocation5 + $0xc8] sm:$0xff]
    %v82 = vld [vmem:[#allocation5 + $0xd0] sm:$0xff]
    %v83 = vld [vmem:[#allocation5 + $0xd8] sm:$0xff]
    %v84 = vld [vmem:[#allocation5 + $0xe0] sm:$0xff]
    %v85 = vld [vmem:[#allocation5 + $0xe8] sm:$0xff]
    %v86 = vld [vmem:[#allocation5 + $0xf0] sm:$0xff]
    %v87 = vld [vmem:[#allocation5 + $0xf8] sm:$0xff]
    %v120 = vunpack.c.l.b16 %v56
    %v121 = vunpack.c.h.b16 %v56
    %v122 = vunpack.c.l.b16 %v57
    %v123 = vunpack.c.h.b16 %v57
    %v124 = vunpack.c.l.b16 %v58
    %v125 = vunpack.c.h.b16 %v58
    %v126 = vunpack.c.l.b16 %v59
    %v127 = vunpack.c.h.b16 %v59
    %v128 = vunpack.c.l.b16 %v60
    %v129 = vunpack.c.h.b16 %v60
    %v130 = vunpack.c.l.b16 %v61
    %v131 = vunpack.c.h.b16 %v61
    %v132 = vunpack.c.l.b16 %v62
    %v133 = vunpack.c.h.b16 %v62
    %v134 = vunpack.c.l.b16 %v63
    %v135 = vunpack.c.h.b16 %v63
    %v136 = vunpack.c.l.b16 %v64
    %v137 = vunpack.c.h.b16 %v64
    %v138 = vunpack.c.l.b16 %v65
    %v139 = vunpack.c.h.b16 %v65
    %v140 = vunpack.c.l.b16 %v66
    %v141 = vunpack.c.h.b16 %v66
    %v142 = vunpack.c.l.b16 %v67
    %v143 = vunpack.c.h.b16 %v67
    %v144 = vunpack.c.l.b16 %v68
    %v145 = vunpack.c.h.b16 %v68
    %v146 = vunpack.c.l.b16 %v69
    %v147 = vunpack.c.h.b16 %v69
    %v148 = vunpack.c.l.b16 %v70
    %v149 = vunpack.c.h.b16 %v70
    %v150 = vunpack.c.l.b16 %v71
    %v151 = vunpack.c.h.b16 %v71
    %v152 = vunpack.c.l.b16 %v72
    %v153 = vunpack.c.h.b16 %v72
    %v154 = vunpack.c.l.b16 %v73
    %v155 = vunpack.c.h.b16 %v73
    %v156 = vunpack.c.l.b16 %v74
    %v157 = vunpack.c.h.b16 %v74
    %v158 = vunpack.c.l.b16 %v75
    %v159 = vunpack.c.h.b16 %v75
    %v160 = vunpack.c.l.b16 %v76
    %v161 = vunpack.c.h.b16 %v76
    %v162 = vunpack.c.l.b16 %v77
    %v163 = vunpack.c.h.b16 %v77
    %v164 = vunpack.c.l.b16 %v78
    %v165 = vunpack.c.h.b16 %v78
    %v166 = vunpack.c.l.b16 %v79
    %v167 = vunpack.c.h.b16 %v79
    %v168 = vunpack.c.l.b16 %v80
    %v169 = vunpack.c.h.b16 %v80
    %v170 = vunpack.c.l.b16 %v81
    %v171 = vunpack.c.h.b16 %v81
    %v172 = vunpack.c.l.b16 %v82
    %v173 = vunpack.c.h.b16 %v82
    %v174 = vunpack.c.l.b16 %v83
    %v175 = vunpack.c.h.b16 %v83
    %v176 = vunpack.c.l.b16 %v84
    %v177 = vunpack.c.h.b16 %v84
    %v178 = vunpack.c.l.b16 %v85
    %v179 = vunpack.c.h.b16 %v85
    %v180 = vunpack.c.l.b16 %v86
    %v181 = vunpack.c.h.b16 %v86
    %v182 = vunpack.c.l.b16 %v87
    %v183 = vunpack.c.h.b16 %v87
    %v184 = vpack.c.b16 %v124, %v120
    %v185 = vpack.c.b16 %v125, %v121
    %v186 = vpack.c.b16 %v126, %v122
    %v187 = vpack.c.b16 %v127, %v123
    %v188 = vpack.c.b16 %v132, %v128
    %v189 = vpack.c.b16 %v133, %v129
    %v190 = vpack.c.b16 %v134, %v130
    %v191 = vpack.c.b16 %v135, %v131
    %v192 = vpack.c.b16 %v140, %v136
    %v193 = vpack.c.b16 %v141, %v137
    %v194 = vpack.c.b16 %v142, %v138
    %v195 = vpack.c.b16 %v143, %v139
    %v196 = vpack.c.b16 %v148, %v144
    %v197 = vpack.c.b16 %v149, %v145
    %v198 = vpack.c.b16 %v150, %v146
    %v199 = vpack.c.b16 %v151, %v147
    %v200 = vpack.c.b16 %v156, %v152
    %v201 = vpack.c.b16 %v157, %v153
    %v202 = vpack.c.b16 %v158, %v154
    %v203 = vpack.c.b16 %v159, %v155
    %v204 = vpack.c.b16 %v164, %v160
    %v205 = vpack.c.b16 %v165, %v161
    %v206 = vpack.c.b16 %v166, %v162
    %v207 = vpack.c.b16 %v167, %v163
    %v208 = vpack.c.b16 %v172, %v168
    %v209 = vpack.c.b16 %v173, %v169
    %v210 = vpack.c.b16 %v174, %v170
    %v211 = vpack.c.b16 %v175, %v171
    %v212 = vpack.c.b16 %v180, %v176
    %v213 = vpack.c.b16 %v181, %v177
    %v214 = vpack.c.b16 %v182, %v178
    %v215 = vpack.c.b16 %v183, %v179
    %248 = vmatprep.subr.bf16.mxu0 %v185
    %249 = vmatpush1.bf16.msra.mxu0 %v184
    %250 = vmatprep.subr.bf16.mxu0 %v189
    %251 = vmatpush1.bf16.msra.mxu0 %v188
    %252 = vmatprep.subr.bf16.mxu0 %v193
    %253 = vmatpush1.bf16.msra.mxu0 %v192
    %254 = vmatprep.subr.bf16.mxu0 %v197
    %255 = vmatpush1.bf16.msra.mxu0 %v196
    %256 = vmatprep.subr.bf16.mxu0 %v201
    %257 = vmatpush1.bf16.msra.mxu0 %v200
    %258 = vmatprep.subr.bf16.mxu0 %v205
    %259 = vmatpush1.bf16.msra.mxu0 %v204
    %260 = vmatprep.subr.bf16.mxu0 %v209
    %261 = vmatpush1.bf16.msra.mxu0 %v208
    %262 = vmatprep.subr.bf16.mxu0 %v213
    %263 = vmatpush1.bf16.msra.mxu0 %v212
    %264 = vmatprep.subr.bf16.mxu0 0
    %265 = vmatpush1.bf16.msra.mxu0 0
    %266 = vmatprep.subr.bf16.mxu0 0
    %267 = vmatpush1.bf16.msra.mxu0 0
    %268 = vmatprep.subr.bf16.mxu0 0
    %269 = vmatpush1.bf16.msra.mxu0 0
    %270 = vmatprep.subr.bf16.mxu0 0
    %271 = vmatpush1.bf16.msra.mxu0 0
    %272 = vmatprep.subr.bf16.mxu0 0
    %273 = vmatpush1.bf16.msra.mxu0 0
    %274 = vmatprep.subr.bf16.mxu0 0
    %275 = vmatpush1.bf16.msra.mxu0 0
    %276 = vmatprep.subr.bf16.mxu0 0
    %277 = vmatpush1.bf16.msra.mxu0 0
    %278 = vmatprep.subr.bf16.mxu0 0
    %279 = vmatpush1.bf16.msra.mxu0 0
    %280 = vmatprep.mubr.bf16.mxu0 0
    %281 = vmatmul.mubr.bf16.gmra.mrb[0].mxu0 %v52
    %v282 = vpop.f32.mrb[0].mxu0
    %v283 = vadd.f32 0.0, %v282
    %v284 = vpop.f32.mrb[0].mxu0
    %v285 = vadd.f32 0.0, %v284
    %v286 = vpop.f32.mrb[0].mxu0
    %v287 = vpop.f32.mrb[0].mxu0
    %288 = vdwg.mxu0
    %289 = vmatprep.subr.bf16.mxu0 %v187
    %290 = vmatpush1.bf16.msra.mxu0 %v186
    %291 = vmatprep.subr.bf16.mxu0 %v191
    %292 = vmatpush1.bf16.msra.mxu0 %v190
    %293 = vmatprep.subr.bf16.mxu0 %v195
    %294 = vmatpush1.bf16.msra.mxu0 %v194
    %295 = vmatprep.subr.bf16.mxu0 %v199
    %296 = vmatpush1.bf16.msra.mxu0 %v198
    %297 = vmatprep.subr.bf16.mxu0 %v203
    %298 = vmatpush1.bf16.msra.mxu0 %v202
    %299 = vmatprep.subr.bf16.mxu0 %v207
    %300 = vmatpush1.bf16.msra.mxu0 %v206
    %301 = vmatprep.subr.bf16.mxu0 %v211
    %302 = vmatpush1.bf16.msra.mxu0 %v210
    %303 = vmatprep.subr.bf16.mxu0 %v215
    %304 = vmatpush1.bf16.msra.mxu0 %v214
    %305 = vmatprep.subr.bf16.mxu0 0
    %306 = vmatpush1.bf16.msra.mxu0 0
    %307 = vmatprep.subr.bf16.mxu0 0
    %308 = vmatpush1.bf16.msra.mxu0 0
    %309 = vmatprep.subr.bf16.mxu0 0
    %310 = vmatpush1.bf16.msra.mxu0 0
    %311 = vmatprep.subr.bf16.mxu0 0
    %312 = vmatpush1.bf16.msra.mxu0 0
    %313 = vmatprep.subr.bf16.mxu0 0
    %314 = vmatpush1.bf16.msra.mxu0 0
    %315 = vmatprep.subr.bf16.mxu0 0
    %316 = vmatpush1.bf16.msra.mxu0 0
    %317 = vmatprep.subr.bf16.mxu0 0
    %318 = vmatpush1.bf16.msra.mxu0 0
    %319 = vmatprep.subr.bf16.mxu0 0
    %320 = vmatpush1.bf16.msra.mxu0 0
    %321 = vmatprep.mubr.bf16.mxu0 0
    %322 = vmatmul.mubr.bf16.gmra.mrb[0].mxu0 %v52
    %v323 = vpop.f32.mrb[0].mxu0
    %v324 = vadd.f32 0.0, %v323
    %v325 = vpop.f32.mrb[0].mxu0
    %v326 = vadd.f32 0.0, %v325
    %v327 = vpop.f32.mrb[0].mxu0
    %v328 = vpop.f32.mrb[0].mxu0
    %329 = vdwg.mxu0
    %330 = vmatprep.subr.bf16.mxu0 %v185
    %331 = vmatpush1.bf16.msra.mxu0 %v184
    %332 = vmatprep.subr.bf16.mxu0 %v189
    %333 = vmatpush1.bf16.msra.mxu0 %v188
    %334 = vmatprep.subr.bf16.mxu0 %v193
    %335 = vmatpush1.bf16.msra.mxu0 %v192
    %336 = vmatprep.subr.bf16.mxu0 %v197
    %337 = vmatpush1.bf16.msra.mxu0 %v196
    %338 = vmatprep.subr.bf16.mxu0 %v201
    %339 = vmatpush1.bf16.msra.mxu0 %v200
    %340 = vmatprep.subr.bf16.mxu0 %v205
    %341 = vmatpush1.bf16.msra.mxu0 %v204
    %342 = vmatprep.subr.bf16.mxu0 %v209
    %343 = vmatpush1.bf16.msra.mxu0 %v208
    %344 = vmatprep.subr.bf16.mxu0 %v213
    %345 = vmatpush1.bf16.msra.mxu0 %v212
    %346 = vmatprep.subr.bf16.mxu0 0
    %347 = vmatpush1.bf16.msra.mxu0 0
    %348 = vmatprep.subr.bf16.mxu0 0
    %349 = vmatpush1.bf16.msra.mxu0 0
    %350 = vmatprep.subr.bf16.mxu0 0
    %351 = vmatpush1.bf16.msra.mxu0 0
    %352 = vmatprep.subr.bf16.mxu0 0
    %353 = vmatpush1.bf16.msra.mxu0 0
    %354 = vmatprep.subr.bf16.mxu0 0
    %355 = vmatpush1.bf16.msra.mxu0 0
    %356 = vmatprep.subr.bf16.mxu0 0
    %357 = vmatpush1.bf16.msra.mxu0 0
    %358 = vmatprep.subr.bf16.mxu0 0
    %359 = vmatpush1.bf16.msra.mxu0 0
    %360 = vmatprep.subr.bf16.mxu0 0
    %361 = vmatpush1.bf16.msra.mxu0 0
    %362 = vmatprep.mubr.bf16.mxu0 0
    %363 = vmatmul.mubr.bf16.gmra.mrb[0].mxu0 %v49
    %v364 = vpop.f32.mrb[0].mxu0
    %v365 = vadd.f32 %v283, %v364
    %v366 = vpop.f32.mrb[0].mxu0
    %v367 = vadd.f32 %v285, %v366
    %v368 = vpop.f32.mrb[0].mxu0
    %v369 = vpop.f32.mrb[0].mxu0
    %370 = vdwg.mxu0
    %371 = vmatprep.subr.bf16.mxu0 %v187
    %372 = vmatpush1.bf16.msra.mxu0 %v186
    %373 = vmatprep.subr.bf16.mxu0 %v191
    %374 = vmatpush1.bf16.msra.mxu0 %v190
    %375 = vmatprep.subr.bf16.mxu0 %v195
    %376 = vmatpush1.bf16.msra.mxu0 %v194
    %377 = vmatprep.subr.bf16.mxu0 %v199
    %378 = vmatpush1.bf16.msra.mxu0 %v198
    %379 = vmatprep.subr.bf16.mxu0 %v203
    %380 = vmatpush1.bf16.msra.mxu0 %v202
    %381 = vmatprep.subr.bf16.mxu0 %v207
    %382 = vmatpush1.bf16.msra.mxu0 %v206
    %383 = vmatprep.subr.bf16.mxu0 %v211
    %384 = vmatpush1.bf16.msra.mxu0 %v210
    %385 = vmatprep.subr.bf16.mxu0 %v215
    %386 = vmatpush1.bf16.msra.mxu0 %v214
    %387 = vmatprep.subr.bf16.mxu0 0
    %388 = vmatpush1.bf16.msra.mxu0 0
    %389 = vmatprep.subr.bf16.mxu0 0
    %390 = vmatpush1.bf16.msra.mxu0 0
    %391 = vmatprep.subr.bf16.mxu0 0
    %392 = vmatpush1.bf16.msra.mxu0 0
    %393 = vmatprep.subr.bf16.mxu0 0
    %394 = vmatpush1.bf16.msra.mxu0 0
    %395 = vmatprep.subr.bf16.mxu0 0
    %396 = vmatpush1.bf16.msra.mxu0 0
    %397 = vmatprep.subr.bf16.mxu0 0
    %398 = vmatpush1.bf16.msra.mxu0 0
    %399 = vmatprep.subr.bf16.mxu0 0
    %400 = vmatpush1.bf16.msra.mxu0 0
    %401 = vmatprep.subr.bf16.mxu0 0
    %402 = vmatpush1.bf16.msra.mxu0 0
    %403 = vmatprep.mubr.bf16.mxu0 0
    %404 = vmatmul.mubr.bf16.gmra.mrb[0].mxu0 %v49
    %v405 = vpop.f32.mrb[0].mxu0
    %v406 = vadd.f32 %v324, %v405
    %v407 = vpop.f32.mrb[0].mxu0
    %v408 = vadd.f32 %v326, %v407
    %v409 = vpop.f32.mrb[0].mxu0
    %v410 = vpop.f32.mrb[0].mxu0
    %411 = vdwg.mxu0
    %412 = vmatprep.subr.bf16.mxu0 %v185
    %413 = vmatpush1.bf16.msra.mxu0 %v184
    %414 = vmatprep.subr.bf16.mxu0 %v189
    %415 = vmatpush1.bf16.msra.mxu0 %v188
    %416 = vmatprep.subr.bf16.mxu0 %v193
    %417 = vmatpush1.bf16.msra.mxu0 %v192
    %418 = vmatprep.subr.bf16.mxu0 %v197
    %419 = vmatpush1.bf16.msra.mxu0 %v196
    %420 = vmatprep.subr.bf16.mxu0 %v201
    %421 = vmatpush1.bf16.msra.mxu0 %v200
    %422 = vmatprep.subr.bf16.mxu0 %v205
    %423 = vmatpush1.bf16.msra.mxu0 %v204
    %424 = vmatprep.subr.bf16.mxu0 %v209
    %425 = vmatpush1.bf16.msra.mxu0 %v208
    %426 = vmatprep.subr.bf16.mxu0 %v213
    %427 = vmatpush1.bf16.msra.mxu0 %v212
    %428 = vmatprep.subr.bf16.mxu0 0
    %429 = vmatpush1.bf16.msra.mxu0 0
    %430 = vmatprep.subr.bf16.mxu0 0
    %431 = vmatpush1.bf16.msra.mxu0 0
    %432 = vmatprep.subr.bf16.mxu0 0
    %433 = vmatpush1.bf16.msra.mxu0 0
    %434 = vmatprep.subr.bf16.mxu0 0
    %435 = vmatpush1.bf16.msra.mxu0 0
    %436 = vmatprep.subr.bf16.mxu0 0
    %437 = vmatpush1.bf16.msra.mxu0 0
    %438 = vmatprep.subr.bf16.mxu0 0
    %439 = vmatpush1.bf16.msra.mxu0 0
    %440 = vmatprep.subr.bf16.mxu0 0
    %441 = vmatpush1.bf16.msra.mxu0 0
    %442 = vmatprep.subr.bf16.mxu0 0
    %443 = vmatpush1.bf16.msra.mxu0 0
    %444 = vmatprep.mubr.bf16.mxu0 0
    %445 = vmatmul.mubr.bf16.gmra.mrb[0].mxu0 %v55
    %v446 = vpop.f32.mrb[0].mxu0
    %v447 = vadd.f32 0.0, %v446
    %v448 = vpop.f32.mrb[0].mxu0
    %v449 = vadd.f32 0.0, %v448
    %v450 = vpop.f32.mrb[0].mxu0
    %v451 = vpop.f32.mrb[0].mxu0
    %452 = vdwg.mxu0
    %453 = vmatprep.subr.bf16.mxu0 %v187
    %454 = vmatpush1.bf16.msra.mxu0 %v186
    %455 = vmatprep.subr.bf16.mxu0 %v191
    %456 = vmatpush1.bf16.msra.mxu0 %v190
    %457 = vmatprep.subr.bf16.mxu0 %v195
    %458 = vmatpush1.bf16.msra.mxu0 %v194
    %459 = vmatprep.subr.bf16.mxu0 %v199
    %460 = vmatpush1.bf16.msra.mxu0 %v198
    %461 = vmatprep.subr.bf16.mxu0 %v203
    %462 = vmatpush1.bf16.msra.mxu0 %v202
    %463 = vmatprep.subr.bf16.mxu0 %v207
    %464 = vmatpush1.bf16.msra.mxu0 %v206
    %465 = vmatprep.subr.bf16.mxu0 %v211
    %466 = vmatpush1.bf16.msra.mxu0 %v210
    %467 = vmatprep.subr.bf16.mxu0 %v215
    %468 = vmatpush1.bf16.msra.mxu0 %v214
    %469 = vmatprep.subr.bf16.mxu0 0
    %470 = vmatpush1.bf16.msra.mxu0 0
    %471 = vmatprep.subr.bf16.mxu0 0
    %472 = vmatpush1.bf16.msra.mxu0 0
    %473 = vmatprep.subr.bf16.mxu0 0
    %474 = vmatpush1.bf16.msra.mxu0 0
    %475 = vmatprep.subr.bf16.mxu0 0
    %476 = vmatpush1.bf16.msra.mxu0 0
    %477 = vmatprep.subr.bf16.mxu0 0
    %478 = vmatpush1.bf16.msra.mxu0 0
    %479 = vmatprep.subr.bf16.mxu0 0
    %480 = vmatpush1.bf16.msra.mxu0 0
    %481 = vmatprep.subr.bf16.mxu0 0
    %482 = vmatpush1.bf16.msra.mxu0 0
    %483 = vmatprep.subr.bf16.mxu0 0
    %484 = vmatpush1.bf16.msra.mxu0 0
    %485 = vmatprep.mubr.bf16.mxu0 0
    %486 = vmatmul.mubr.bf16.gmra.mrb[0].mxu0 %v55
    %v487 = vpop.f32.mrb[0].mxu0
    %v488 = vadd.f32 0.0, %v487
    %v489 = vpop.f32.mrb[0].mxu0
    %v490 = vadd.f32 0.0, %v489
    %v491 = vpop.f32.mrb[0].mxu0
    %v492 = vpop.f32.mrb[0].mxu0
    %493 = vdwg.mxu0
    %v494 = vadd.f32 %v365, %v447
    %v495 = vadd.f32 %v367, %v449
    %v496 = vadd.f32 %v406, %v488
    %v497 = vadd.f32 %v408, %v490
    %v498 = vld [vmem:[%s2] sm:$0xf]
    %v500 = vlaneseq
    %v501 = vshrl.u32 %v500, 7
    %v502 = vsub.s32 0, %v501
    %v503 = vrot.slane %v498, %v502
    %v504 = vlaneseq
    %v505 = vshrl.u32 %v504, 7
    %v506 = vsub.s32 1, %v505
    %v507 = vrot.slane %v498, %v506
    %v508 = vlaneseq
    %v509 = vshrl.u32 %v508, 7
    %v510 = vsub.s32 2, %v509
    %v511 = vrot.slane %v498, %v510
    %v512 = vlaneseq
    %v513 = vshrl.u32 %v512, 7
    %v514 = vsub.s32 3, %v513
    %v515 = vrot.slane %v498, %v514
    %v520 = vsub.f32 %v494, %v503
    %v521 = vsub.f32 %v495, %v507
    %v522 = vsub.f32 %v496, %v511
    %v523 = vsub.f32 %v497, %v515
    %v524 = vld [vmem:[%s3] sm:$0xf]
    %v526 = vlaneseq
    %v527 = vshrl.u32 %v526, 7
    %v528 = vsub.s32 0, %v527
    %v529 = vrot.slane %v524, %v528
    %v530 = vlaneseq
    %v531 = vshrl.u32 %v530, 7
    %v532 = vsub.s32 1, %v531
    %v533 = vrot.slane %v524, %v532
    %v534 = vlaneseq
    %v535 = vshrl.u32 %v534, 7
    %v536 = vsub.s32 2, %v535
    %v537 = vrot.slane %v524, %v536
    %v538 = vlaneseq
    %v539 = vshrl.u32 %v538, 7
    %v540 = vsub.s32 3, %v539
    %v541 = vrot.slane %v524, %v540
    %v546 = vmul.f32 %v520, %v529
    %v547 = vmul.f32 %v521, %v533
    %v548 = vmul.f32 %v522, %v537
    %v549 = vmul.f32 %v523, %v541
    %v550 = vld [vmem:[%s4] sm:$0xf]
    %v552 = vlaneseq
    %v553 = vshrl.u32 %v552, 7
    %v554 = vsub.s32 0, %v553
    %v555 = vrot.slane %v550, %v554
    %v556 = vlaneseq
    %v557 = vshrl.u32 %v556, 7
    %v558 = vsub.s32 1, %v557
    %v559 = vrot.slane %v550, %v558
    %v560 = vlaneseq
    %v561 = vshrl.u32 %v560, 7
    %v562 = vsub.s32 2, %v561
    %v563 = vrot.slane %v550, %v562
    %v564 = vlaneseq
    %v565 = vshrl.u32 %v564, 7
    %v566 = vsub.s32 3, %v565
    %v567 = vrot.slane %v550, %v566
    %v572 = vadd.f32 %v546, %v555
    %v573 = vadd.f32 %v547, %v559
    %v574 = vadd.f32 %v548, %v563
    %v575 = vadd.f32 %v549, %v567
    %v576 = vand.u32 2147483647, %v572
    %vm577 = vcmp.le.f32.partialorder %v576, 0.7853982
    %vm578 = vcmp.lt.s32.totalorder %v572, 0
    %v579 = vand.u32 %v572, 2139095040
    %v580 = vshrl.u32 %v579, 23
    %v581 = vsub.s32 %v580, 127
    %v582 = vand.u32 2147483647, %v572
    %v583 = vand.u32 %v582, 8388607
    %v584 = vor.u32 %v583, 8388608
    %v585 = vsub.s32 0, %v584
    %v586 = vadd.s32 %v581, 1
    %vm587 = vcmp.gt.s32.totalorder %v586, 0
    %v588 = vsel %vm587, %v586, 0
    %v589 = vshrl.u32 %v588, 5
    %v590 = vand.u32 %v588, 31
    %v591 = vsub.s32 32, %v590
    %v592 = vshrl.u32 683565275, %v591
    %v593 = vshll.u32 683565275, %v590
    %v594 = vshrl.u32 2475754826, %v591
    %v595 = vor.u32 %v593, %v594
    %v596 = vshll.u32 2475754826, %v590
    %v597 = vshrl.u32 2131351028, %v591
    %v598 = vor.u32 %v596, %v597
    %v599 = vshll.u32 2131351028, %v590
    %v600 = vshrl.u32 2102212464, %v591
    %v601 = vor.u32 %v599, %v600
    %v602 = vshll.u32 2102212464, %v590
    %v603 = vshrl.u32 920167782, %v591
    %v604 = vor.u32 %v602, %v603
    %v605 = vshll.u32 920167782, %v590
    %v606 = vshrl.u32 1326507024, %v591
    %v607 = vor.u32 %v605, %v606
    %vm608 = vcmp.lt.s32.totalorder %v589, 1
    %vm609 = vcmp.lt.s32.totalorder %v589, 2
    %vm610 = vcmp.lt.s32.totalorder %v589, 3
    %vm611 = vcmp.lt.s32.totalorder %v589, 4
    %v612 = vsel %vm608, %v592, %v595
    %v613 = vsel %vm611, %v601, 2102212464
    %v614 = vsel %vm610, %v598, %v613
    %v615 = vsel %vm609, %v612, %v614
    %v616 = vsel %vm608, %v595, %v598
    %v617 = vsel %vm611, %v604, 920167782
    %v618 = vsel %vm610, %v601, %v617
    %v619 = vsel %vm609, %v616, %v618
    %v620 = vsel %vm608, %v598, %v601
    %v621 = vsel %vm611, %v607, 1326507024
    %v622 = vsel %vm610, %v604, %v621
    %v623 = vsel %vm609, %v620, %v622
    %v624 = vshll.u32 %v584, 8
    %v625 = vmul.u32.u64.compose %v624, %v623
    %v626 = vextract.low.u32 %v625
    %v627 = vextract.high.u32 %v625
    %v628 = vmul.u32.u64.compose %v624, %v619
    %v629 = vextract.low.u32 %v628
    %v630 = vextract.high.u32 %v628
    %v631 = vmul.u32 %v624, %v615
    %v632 = vadd.s32 %v627, %v629
    %vm633 = vc.u32 %v627, %v629
    %v634 = vadd.s32 %v630, 1
    %v635 = vsel %vm633, %v634, %v630
    %v636 = vadd.s32 %v631, %v635
    %v637 = vadd.s32 %v636, 536870912
    %v638 = vshrl.u32 %v637, 30
    %v639 = vshll.u32 %v638, 30
    %v640 = vsub.s32 %v636, %v639
    %vm641 = vcmp.lt.s32.totalorder %v640, 0
    %v642 = vsub.s32 0, %v640
    %v643 = vsel %vm641, %v642, %v640
    %v644 = vclz %v643
    %v645 = vsub.s32 %v644, 2
    %vm646 = vcmp.gt.s32.totalorder 0, %v645
    %v647 = vsel %vm646, 0, %v645
    %v648 = vsub.s32 32, %v647
    %v649 = vshll.u32 %v640, %v647
    %v650 = vshrl.u32 %v632, %v648
    %v651 = vor.u32 %v649, %v650
    %v652 = vsub.s32 4294967266, %v647
    %v653 = vadd.s32 %v652, 127
    %v654 = vshll.u32 %v653, 23
    %v655 = vor.u32 4788187, %v654
    %v656 = vand.u32 2147483647, %v655
    %v658 = vcvt.s32.f32 %v651
    %v659 = vmul.f32 %v658, %v656
    %v660 = vxor.u32 %v659, 2147483648
    %v661 = vsel %vm578, %v660, %v659
    %v662 = vsub.s32 4, %v638
    %v663 = vsel %vm578, %v662, %v638
    %v664 = vsel %vm577, %v572, %v661
    %v665 = vsel %vm577, 0, %v663
    %v666 = vcosq.f32.pop %v664
    %v667 = vsinq.f32.pop %v664
    %vm668 = vweird.f32 %v572
    %v669 = vadd.s32 %v665, 3
    %v670 = vand.u32 %v669, 3
    %vm671 = vcmp.lt.s32.totalorder %v670, 2
    %vm672 = vcmp.eq.s32.totalorder %v670, 0
    %v673 = vxor.u32 %v667, 2147483648
    %v674 = vsel %vm672, %v666, %v673
    %vm675 = vcmp.eq.s32.totalorder %v670, 2
    %v676 = vxor.u32 %v666, 2147483648
    %v677 = vsel %vm675, %v676, %v667
    %v678 = vsel %vm671, %v674, %v677
    %v679 = vsel %vm668, nan, %v678
    %v680 = vand.u32 2147483647, %v573
    %vm681 = vcmp.le.f32.partialorder %v680, 0.7853982
    %vm682 = vcmp.lt.s32.totalorder %v573, 0
    %v683 = vand.u32 %v573, 2139095040
    %v684 = vshrl.u32 %v683, 23
    %v685 = vsub.s32 %v684, 127
    %v686 = vand.u32 2147483647, %v573
    %v687 = vand.u32 %v686, 8388607
    %v688 = vor.u32 %v687, 8388608
    %v689 = vsub.s32 0, %v688
    %v690 = vadd.s32 %v685, 1
    %vm691 = vcmp.gt.s32.totalorder %v690, 0
    %v692 = vsel %vm691, %v690, 0
    %v693 = vshrl.u32 %v692, 5
    %v694 = vand.u32 %v692, 31
    %v695 = vsub.s32 32, %v694
    %v696 = vshrl.u32 683565275, %v695
    %v697 = vshll.u32 683565275, %v694
    %v698 = vshrl.u32 2475754826, %v695
    %v699 = vor.u32 %v697, %v698
    %v700 = vshll.u32 2475754826, %v694
    %v701 = vshrl.u32 2131351028, %v695
    %v702 = vor.u32 %v700, %v701
    %v703 = vshll.u32 2131351028, %v694
    %v704 = vshrl.u32 2102212464, %v695
    %v705 = vor.u32 %v703, %v704
    %v706 = vshll.u32 2102212464, %v694
    %v707 = vshrl.u32 920167782, %v695
    %v708 = vor.u32 %v706, %v707
    %v709 = vshll.u32 920167782, %v694
    %v710 = vshrl.u32 1326507024, %v695
    %v711 = vor.u32 %v709, %v710
    %vm712 = vcmp.lt.s32.totalorder %v693, 1
    %vm713 = vcmp.lt.s32.totalorder %v693, 2
    %vm714 = vcmp.lt.s32.totalorder %v693, 3
    %vm715 = vcmp.lt.s32.totalorder %v693, 4
    %v716 = vsel %vm712, %v696, %v699
    %v717 = vsel %vm715, %v705, 2102212464
    %v718 = vsel %vm714, %v702, %v717
    %v719 = vsel %vm713, %v716, %v718
    %v720 = vsel %vm712, %v699, %v702
    %v721 = vsel %vm715, %v708, 920167782
    %v722 = vsel %vm714, %v705, %v721
    %v723 = vsel %vm713, %v720, %v722
    %v724 = vsel %vm712, %v702, %v705
    %v725 = vsel %vm715, %v711, 1326507024
    %v726 = vsel %vm714, %v708, %v725
    %v727 = vsel %vm713, %v724, %v726
    %v728 = vshll.u32 %v688, 8
    %v729 = vmul.u32.u64.compose %v728, %v727
    %v730 = vextract.low.u32 %v729
    %v731 = vextract.high.u32 %v729
    %v732 = vmul.u32.u64.compose %v728, %v723
    %v733 = vextract.low.u32 %v732
    %v734 = vextract.high.u32 %v732
    %v735 = vmul.u32 %v728, %v719
    %v736 = vadd.s32 %v731, %v733
    %vm737 = vc.u32 %v731, %v733
    %v738 = vadd.s32 %v734, 1
    %v739 = vsel %vm737, %v738, %v734
    %v740 = vadd.s32 %v735, %v739
    %v741 = vadd.s32 %v740, 536870912
    %v742 = vshrl.u32 %v741, 30
    %v743 = vshll.u32 %v742, 30
    %v744 = vsub.s32 %v740, %v743
    %vm745 = vcmp.lt.s32.totalorder %v744, 0
    %v746 = vsub.s32 0, %v744
    %v747 = vsel %vm745, %v746, %v744
    %v748 = vclz %v747
    %v749 = vsub.s32 %v748, 2
    %vm750 = vcmp.gt.s32.totalorder 0, %v749
    %v751 = vsel %vm750, 0, %v749
    %v752 = vsub.s32 32, %v751
    %v753 = vshll.u32 %v744, %v751
    %v754 = vshrl.u32 %v736, %v752
    %v755 = vor.u32 %v753, %v754
    %v756 = vsub.s32 4294967266, %v751
    %v757 = vadd.s32 %v756, 127
    %v758 = vshll.u32 %v757, 23
    %v759 = vor.u32 4788187, %v758
    %v760 = vand.u32 2147483647, %v759
    %v762 = vcvt.s32.f32 %v755
    %v763 = vmul.f32 %v762, %v760
    %v764 = vxor.u32 %v763, 2147483648
    %v765 = vsel %vm682, %v764, %v763
    %v766 = vsub.s32 4, %v742
    %v767 = vsel %vm682, %v766, %v742
    %v768 = vsel %vm681, %v573, %v765
    %v769 = vsel %vm681, 0, %v767
    %v770 = vcosq.f32.pop %v768
    %v771 = vsinq.f32.pop %v768
    %vm772 = vweird.f32 %v573
    %v773 = vadd.s32 %v769, 3
    %v774 = vand.u32 %v773, 3
    %vm775 = vcmp.lt.s32.totalorder %v774, 2
    %vm776 = vcmp.eq.s32.totalorder %v774, 0
    %v777 = vxor.u32 %v771, 2147483648
    %v778 = vsel %vm776, %v770, %v777
    %vm779 = vcmp.eq.s32.totalorder %v774, 2
    %v780 = vxor.u32 %v770, 2147483648
    %v781 = vsel %vm779, %v780, %v771
    %v782 = vsel %vm775, %v778, %v781
    %v783 = vsel %vm772, nan, %v782
    %v784 = vand.u32 2147483647, %v574
    %vm785 = vcmp.le.f32.partialorder %v784, 0.7853982
    %vm786 = vcmp.lt.s32.totalorder %v574, 0
    %v787 = vand.u32 %v574, 2139095040
    %v788 = vshrl.u32 %v787, 23
    %v789 = vsub.s32 %v788, 127
    %v790 = vand.u32 2147483647, %v574
    %v791 = vand.u32 %v790, 8388607
    %v792 = vor.u32 %v791, 8388608
    %v793 = vsub.s32 0, %v792
    %v794 = vadd.s32 %v789, 1
    %vm795 = vcmp.gt.s32.totalorder %v794, 0
    %v796 = vsel %vm795, %v794, 0
    %v797 = vshrl.u32 %v796, 5
    %v798 = vand.u32 %v796, 31
    %v799 = vsub.s32 32, %v798
    %v800 = vshrl.u32 683565275, %v799
    %v801 = vshll.u32 683565275, %v798
    %v802 = vshrl.u32 2475754826, %v799
    %v803 = vor.u32 %v801, %v802
    %v804 = vshll.u32 2475754826, %v798
    %v805 = vshrl.u32 2131351028, %v799
    %v806 = vor.u32 %v804, %v805
    %v807 = vshll.u32 2131351028, %v798
    %v808 = vshrl.u32 2102212464, %v799
    %v809 = vor.u32 %v807, %v808
    %v810 = vshll.u32 2102212464, %v798
    %v811 = vshrl.u32 920167782, %v799
    %v812 = vor.u32 %v810, %v811
    %v813 = vshll.u32 920167782, %v798
    %v814 = vshrl.u32 1326507024, %v799
    %v815 = vor.u32 %v813, %v814
    %vm816 = vcmp.lt.s32.totalorder %v797, 1
    %vm817 = vcmp.lt.s32.totalorder %v797, 2
    %vm818 = vcmp.lt.s32.totalorder %v797, 3
    %vm819 = vcmp.lt.s32.totalorder %v797, 4
    %v820 = vsel %vm816, %v800, %v803
    %v821 = vsel %vm819, %v809, 2102212464
    %v822 = vsel %vm818, %v806, %v821
    %v823 = vsel %vm817, %v820, %v822
    %v824 = vsel %vm816, %v803, %v806
    %v825 = vsel %vm819, %v812, 920167782
    %v826 = vsel %vm818, %v809, %v825
    %v827 = vsel %vm817, %v824, %v826
    %v828 = vsel %vm816, %v806, %v809
    %v829 = vsel %vm819, %v815, 1326507024
    %v830 = vsel %vm818, %v812, %v829
    %v831 = vsel %vm817, %v828, %v830
    %v832 = vshll.u32 %v792, 8
    %v833 = vmul.u32.u64.compose %v832, %v831
    %v834 = vextract.low.u32 %v833
    %v835 = vextract.high.u32 %v833
    %v836 = vmul.u32.u64.compose %v832, %v827
    %v837 = vextract.low.u32 %v836
    %v838 = vextract.high.u32 %v836
    %v839 = vmul.u32 %v832, %v823
    %v840 = vadd.s32 %v835, %v837
    %vm841 = vc.u32 %v835, %v837
    %v842 = vadd.s32 %v838, 1
    %v843 = vsel %vm841, %v842, %v838
    %v844 = vadd.s32 %v839, %v843
    %v845 = vadd.s32 %v844, 536870912
    %v846 = vshrl.u32 %v845, 30
    %v847 = vshll.u32 %v846, 30
    %v848 = vsub.s32 %v844, %v847
    %vm849 = vcmp.lt.s32.totalorder %v848, 0
    %v850 = vsub.s32 0, %v848
    %v851 = vsel %vm849, %v850, %v848
    %v852 = vclz %v851
    %v853 = vsub.s32 %v852, 2
    %vm854 = vcmp.gt.s32.totalorder 0, %v853
    %v855 = vsel %vm854, 0, %v853
    %v856 = vsub.s32 32, %v855
    %v857 = vshll.u32 %v848, %v855
    %v858 = vshrl.u32 %v840, %v856
    %v859 = vor.u32 %v857, %v858
    %v860 = vsub.s32 4294967266, %v855
    %v861 = vadd.s32 %v860, 127
    %v862 = vshll.u32 %v861, 23
    %v863 = vor.u32 4788187, %v862
    %v864 = vand.u32 2147483647, %v863
    %v866 = vcvt.s32.f32 %v859
    %v867 = vmul.f32 %v866, %v864
    %v868 = vxor.u32 %v867, 2147483648
    %v869 = vsel %vm786, %v868, %v867
    %v870 = vsub.s32 4, %v846
    %v871 = vsel %vm786, %v870, %v846
    %v872 = vsel %vm785, %v574, %v869
    %v873 = vsel %vm785, 0, %v871
    %v874 = vcosq.f32.pop %v872
    %v875 = vsinq.f32.pop %v872
    %vm876 = vweird.f32 %v574
    %v877 = vadd.s32 %v873, 3
    %v878 = vand.u32 %v877, 3
    %vm879 = vcmp.lt.s32.totalorder %v878, 2
    %vm880 = vcmp.eq.s32.totalorder %v878, 0
    %v881 = vxor.u32 %v875, 2147483648
    %v882 = vsel %vm880, %v874, %v881
    %vm883 = vcmp.eq.s32.totalorder %v878, 2
    %v884 = vxor.u32 %v874, 2147483648
    %v885 = vsel %vm883, %v884, %v875
    %v886 = vsel %vm879, %v882, %v885
    %v887 = vsel %vm876, nan, %v886
    %v888 = vand.u32 2147483647, %v575
    %vm889 = vcmp.le.f32.partialorder %v888, 0.7853982
    %vm890 = vcmp.lt.s32.totalorder %v575, 0
    %v891 = vand.u32 %v575, 2139095040
    %v892 = vshrl.u32 %v891, 23
    %v893 = vsub.s32 %v892, 127
    %v894 = vand.u32 2147483647, %v575
    %v895 = vand.u32 %v894, 8388607
    %v896 = vor.u32 %v895, 8388608
    %v897 = vsub.s32 0, %v896
    %v898 = vadd.s32 %v893, 1
    %vm899 = vcmp.gt.s32.totalorder %v898, 0
    %v900 = vsel %vm899, %v898, 0
    %v901 = vshrl.u32 %v900, 5
    %v902 = vand.u32 %v900, 31
    %v903 = vsub.s32 32, %v902
    %v904 = vshrl.u32 683565275, %v903
    %v905 = vshll.u32 683565275, %v902
    %v906 = vshrl.u32 2475754826, %v903
    %v907 = vor.u32 %v905, %v906
    %v908 = vshll.u32 2475754826, %v902
    %v909 = vshrl.u32 2131351028, %v903
    %v910 = vor.u32 %v908, %v909
    %v911 = vshll.u32 2131351028, %v902
    %v912 = vshrl.u32 2102212464, %v903
    %v913 = vor.u32 %v911, %v912
    %v914 = vshll.u32 2102212464, %v902
    %v915 = vshrl.u32 920167782, %v903
    %v916 = vor.u32 %v914, %v915
    %v917 = vshll.u32 920167782, %v902
    %v918 = vshrl.u32 1326507024, %v903
    %v919 = vor.u32 %v917, %v918
    %vm920 = vcmp.lt.s32.totalorder %v901, 1
    %vm921 = vcmp.lt.s32.totalorder %v901, 2
    %vm922 = vcmp.lt.s32.totalorder %v901, 3
    %vm923 = vcmp.lt.s32.totalorder %v901, 4
    %v924 = vsel %vm920, %v904, %v907
    %v925 = vsel %vm923, %v913, 2102212464
    %v926 = vsel %vm922, %v910, %v925
    %v927 = vsel %vm921, %v924, %v926
    %v928 = vsel %vm920, %v907, %v910
    %v929 = vsel %vm923, %v916, 920167782
    %v930 = vsel %vm922, %v913, %v929
    %v931 = vsel %vm921, %v928, %v930
    %v932 = vsel %vm920, %v910, %v913
    %v933 = vsel %vm923, %v919, 1326507024
    %v934 = vsel %vm922, %v916, %v933
    %v935 = vsel %vm921, %v932, %v934
    %v936 = vshll.u32 %v896, 8
    %v937 = vmul.u32.u64.compose %v936, %v935
    %v938 = vextract.low.u32 %v937
    %v939 = vextract.high.u32 %v937
    %v940 = vmul.u32.u64.compose %v936, %v931
    %v941 = vextract.low.u32 %v940
    %v942 = vextract.high.u32 %v940
    %v943 = vmul.u32 %v936, %v927
    %v944 = vadd.s32 %v939, %v941
    %vm945 = vc.u32 %v939, %v941
    %v946 = vadd.s32 %v942, 1
    %v947 = vsel %vm945, %v946, %v942
    %v948 = vadd.s32 %v943, %v947
    %v949 = vadd.s32 %v948, 536870912
    %v950 = vshrl.u32 %v949, 30
    %v951 = vshll.u32 %v950, 30
    %v952 = vsub.s32 %v948, %v951
    %vm953 = vcmp.lt.s32.totalorder %v952, 0
    %v954 = vsub.s32 0, %v952
    %v955 = vsel %vm953, %v954, %v952
    %v956 = vclz %v955
    %v957 = vsub.s32 %v956, 2
    %vm958 = vcmp.gt.s32.totalorder 0, %v957
    %v959 = vsel %vm958, 0, %v957
    %v960 = vsub.s32 32, %v959
    %v961 = vshll.u32 %v952, %v959
    %v962 = vshrl.u32 %v944, %v960
    %v963 = vor.u32 %v961, %v962
    %v964 = vsub.s32 4294967266, %v959
    %v965 = vadd.s32 %v964, 127
    %v966 = vshll.u32 %v965, 23
    %v967 = vor.u32 4788187, %v966
    %v968 = vand.u32 2147483647, %v967
    %v970 = vcvt.s32.f32 %v963
    %v971 = vmul.f32 %v970, %v968
    %v972 = vxor.u32 %v971, 2147483648
    %v973 = vsel %vm890, %v972, %v971
    %v974 = vsub.s32 4, %v950
    %v975 = vsel %vm890, %v974, %v950
    %v976 = vsel %vm889, %v575, %v973
    %v977 = vsel %vm889, 0, %v975
    %v978 = vcosq.f32.pop %v976
    %v979 = vsinq.f32.pop %v976
    %vm980 = vweird.f32 %v575
    %v981 = vadd.s32 %v977, 3
    %v982 = vand.u32 %v981, 3
    %vm983 = vcmp.lt.s32.totalorder %v982, 2
    %vm984 = vcmp.eq.s32.totalorder %v982, 0
    %v985 = vxor.u32 %v979, 2147483648
    %v986 = vsel %vm984, %v978, %v985
    %vm987 = vcmp.eq.s32.totalorder %v982, 2
    %v988 = vxor.u32 %v978, 2147483648
    %v989 = vsel %vm987, %v988, %v979
    %v990 = vsel %vm983, %v986, %v989
    %v991 = vsel %vm980, nan, %v990
    %v992 = vmul.f32 %v679, 1.5
    %v993 = vmul.f32 %v783, 1.5
    %v994 = vmul.f32 %v887, 1.5
    %v995 = vmul.f32 %v991, 1.5
    %v996 = vadd.f32 %v992, 0.25
    %v997 = vadd.f32 %v993, 0.25
    %v998 = vadd.f32 %v994, 0.25
    %v999 = vadd.f32 %v995, 0.25
    %1000 = vst [vmem:[#allocation7] sm:$0xff] %v996
    %1001 = vst [vmem:[#allocation7 + $0x8] sm:$0xff] %v997
    %1002 = vst [vmem:[#allocation7 + $0x10] sm:$0xff] %v998
    %1003 = vst [vmem:[#allocation7 + $0x18] sm:$0xff] %v999
    // Predicated region
    $region30: #{tpu_custom_call.1} parent=1 // pred_check
      _
    $region31: #{tpu_custom_call.1} parent=1 // pred_check_branch
      %1005 = sbr.rel (0) target = $region33
    $region32: #{tpu_custom_call.1} parent=1 // pred_region
      %s1007 = ssub.s32 512, 512
      %1008 = vsyncadd [#allocation4], %s1007
      %s1010 = sshll.u32 [#allocation7], 4
      %s1011 = int_to_ptr.vmem [resolvable:$true] %s1010
      %1013 = dma.vmem_to_hbm [thread:$0]  %s1011, 512, %s5, [#allocation4]
    $region33: #{tpu_custom_call.1} parent=1 // pred_fallthru
      _
    // Predicated region
    $region34: #{tpu_custom_call.1} parent=1 // pred_check
      _
    $region35: #{tpu_custom_call.1} parent=1 // pred_check_branch
      %1015 = sbr.rel (0) target = $region37
    $region36: #{tpu_custom_call.1} parent=1 // pred_region
      %1016 = dma.done [#allocation4], 512
    $region37: #{tpu_custom_call.1} parent=1 // pred_fallthru
      _
    %1017 = vsyncpa [#allocation3], 1
    %1018 = vsyncpa [#allocation6], 1
    %1019 = vsyncpa [#allocation4], 1

</llo_original>
